<compile_context>
chip_gen: v5e
topology: v5e:2x2
jax: 0.10.0
libtpu: 0.0.40
codegen_flags: <defaults>
</compile_context>

<pallas_src>
import functools

import jax
import jax.numpy as jnp
from jax import lax
from jax.experimental import pallas as pl
from jax.experimental.pallas import tpu as pltpu


def _residual_kernel(W, x_ref, w1_ref, b1_ref, wdw_ref, b2_ref, w3_ref,
                     b3_ref, o_ref):
    """One image per grid step; layout (C, H*W) with H*W on the lane axis."""
    Cin, HW = x_ref.shape
    Ch = b1_ref.shape[0]

    x = x_ref[...]                                        # (Cin, HW) f32

    # ---- 1x1 expand conv (BN scale folded into weights) + bias + ReLU6 ------
    # Unrolled outer products on the VPU; w1_ref[ci] is a pre-broadcast
    # (Ch, HW) slab, so each step is a plain elementwise FMA.
    h1 = b1_ref[...]
    for ci in range(Cin):
        h1 = h1 + w1_ref[ci] * x[ci:ci + 1, :]
    h1 = jnp.clip(h1, 0.0, 6.0)                           # (Ch, HW)

    # ---- 3x3 depthwise conv, stride 1, pad 1 ---------------------------------
    # Each tap is a lane roll of the flattened (H*W) axis.  Row / image border
    # handling is folded into the pre-scaled tap weights (zero on every lane
    # whose rolled source is out of bounds), so no scratch, no memset, no
    # masks and no unaligned slices are needed in-kernel.
    acc = b2_ref[...]
    tap = 0
    for ky in range(3):
        for kx in range(3):
            s = (ky - 1) * W + (kx - 1)                   # flattened src offset
            t = h1 if s == 0 else pltpu.roll(h1, shift=(-s) % HW, axis=1)
            acc = acc + wdw_ref[tap] * t
            tap += 1
    h2 = jnp.clip(acc, 0.0, 6.0)                          # (Ch, HW)

    # ---- 1x1 projection conv (BN scale folded) + bias + ReLU6 ----------------
    h3 = b3_ref[...]
    for ch in range(Ch):
        h3 = h3 + w3_ref[ch] * h2[ch:ch + 1, :]
    h3 = jnp.clip(h3, 0.0, 6.0)                           # (Cout, HW)

    # ---- residual connection (stride == 1 and inp == oup) --------------------
    o_ref[...] = x + h3


def residual_forward(x_nchw, kparams):
    """x_nchw: (N, Cin, H, W) float32. Returns (N, Cout, H, W) float32."""
    w1b, b1b, wdwb, b2b, w3b, b3b = kparams
    N, Cin, H, W = x_nchw.shape
    Cout = b3b.shape[0]
    HW = H * W

    # Lane-dense slabs: H*W on the lane axis (256 = 2 x 128), no transpose.
    x_flat = x_nchw.reshape(N, Cin, HW)

    def full(a):
        return pl.BlockSpec(a.shape, lambda n, nd=a.ndim: (0,) * nd)

    out = pl.pallas_call(
        functools.partial(_residual_kernel, W),
        out_shape=jax.ShapeDtypeStruct((N, Cout, HW), jnp.float32),
        grid=(N,),
        in_specs=[
            pl.BlockSpec((pl.Squeezed(), Cin, HW), lambda n: (n, 0, 0)),
            full(w1b), full(b1b), full(wdwb), full(b2b), full(w3b), full(b3b),
        ],
        out_specs=pl.BlockSpec((pl.Squeezed(), Cout, HW), lambda n: (n, 0, 0)),
        compiler_params=pltpu.CompilerParams(
            dimension_semantics=("parallel",)),
    )(x_flat, w1b, b1b, wdwb, b2b, w3b, b3b)
    return out.reshape(N, Cout, H, W)


def _bn_fold(gamma, beta, mean, var, eps=1e-5):
    scale = gamma / jnp.sqrt(var + eps)
    bias = beta - mean * scale
    return scale, bias


def _kernel_params(torch_params, H, W):
    """Fold BN into the conv weights and pre-broadcast everything to the
    lane-dense (C, H*W) layout used by the kernel (wrapper-side plumbing)."""
    w1_t, wdw_t, w3_t, bn1, bn2, bn3 = torch_params
    hidden, inp = w1_t.shape[0], w1_t.shape[1]
    oup = w3_t.shape[0]
    HW = H * W
    f32 = jnp.float32

    s1, b1 = _bn_fold(*bn1)
    s2, b2 = _bn_fold(*bn2)
    s3, b3 = _bn_fold(*bn3)

    # 1x1 expand: w1b[ci, ch, :] = s1[ch] * W1[ch, ci]
    w1 = w1_t.reshape(hidden, inp) * s1[:, None]                   # (Ch, Cin)
    w1b = jnp.broadcast_to(w1.T[:, :, None], (inp, hidden, HW)).astype(f32)
    b1b = jnp.broadcast_to(b1[:, None], (hidden, HW)).astype(f32)

    # 3x3 depthwise: 9 taps in the flattened H*W layout, BN-scaled, with the
    # zero-padding boundary masks folded into the tap weights.
    wdw = wdw_t.reshape(hidden, 3, 3) * s2[:, None, None]          # (Ch, 3, 3)
    p = jnp.arange(HW)
    hh, ww = p // W, p % W
    taps = []
    for ky in range(3):
        for kx in range(3):
            valid = ((hh + ky - 1 >= 0) & (hh + ky - 1 < H) &
                     (ww + kx - 1 >= 0) & (ww + kx - 1 < W)).astype(f32)
            taps.append(wdw[:, ky, kx][:, None] * valid[None, :])  # (Ch, HW)
    wdwb = jnp.stack(taps, axis=0).astype(f32)                     # (9, Ch, HW)
    b2b = jnp.broadcast_to(b2[:, None], (hidden, HW)).astype(f32)

    # 1x1 projection: w3b[ch, co, :] = s3[co] * W3[co, ch]
    w3 = w3_t.reshape(oup, hidden) * s3[:, None]                   # (Cout, Ch)
    w3b = jnp.broadcast_to(w3.T[:, :, None], (hidden, oup, HW)).astype(f32)
    b3b = jnp.broadcast_to(b3[:, None], (oup, HW)).astype(f32)

    return (w1b, b1b, wdwb, b2b, w3b, b3b)


def _make_params(key, inp, oup, hidden):
    ks = jax.random.split(key, 6)
    # PyTorch-convention weights
    w1_t = 0.2 * jax.random.normal(ks[0], (hidden, inp, 1, 1), jnp.float32)
    wdw_t = 0.2 * jax.random.normal(ks[1], (hidden, 1, 3, 3), jnp.float32)
    w3_t = 0.2 * jax.random.normal(ks[2], (oup, hidden, 1, 1), jnp.float32)

    def bn(k, c):
        k1, k2, k3, k4 = jax.random.split(k, 4)
        gamma = 1.0 + 0.1 * jax.random.normal(k1, (c,), jnp.float32)
        beta = 0.05 * jax.random.normal(k2, (c,), jnp.float32)
        mean = 0.1 * jax.random.normal(k3, (c,), jnp.float32)
        var = 0.5 + 0.5 * jnp.abs(jax.random.normal(k4, (c,), jnp.float32))
        return gamma, beta, mean, var

    return (w1_t, wdw_t, w3_t, bn(ks[3], hidden), bn(ks[4], hidden),
            bn(ks[5], oup))


def _reference_nchw(x, torch_params):
    """Pure-JAX reference mirroring the PyTorch module (NCHW, inference BN)."""
    w1_t, wdw_t, w3_t, bn1, bn2, bn3 = torch_params
    hidden = w1_t.shape[0]
    dn = ('NCHW', 'OIHW', 'NCHW')
    hp = lax.Precision.HIGHEST

    def bn_apply(h, bnp):
        gamma, beta, mean, var = bnp
        s, b = _bn_fold(gamma, beta, mean, var)
        return h * s[None, :, None, None] + b[None, :, None, None]

    relu6 = lambda h: jnp.clip(h, 0.0, 6.0)

    h = lax.conv_general_dilated(x, w1_t, (1, 1), 'VALID',
                                 dimension_numbers=dn, precision=hp)
    h = relu6(bn_apply(h, bn1))
    h = lax.conv_general_dilated(h, wdw_t, (1, 1), [(1, 1), (1, 1)],
                                 dimension_numbers=dn,
                                 feature_group_count=hidden, precision=hp)
    h = relu6(bn_apply(h, bn2))
    h = lax.conv_general_dilated(h, w3_t, (1, 1), 'VALID',
                                 dimension_numbers=dn, precision=hp)
    h = relu6(bn_apply(h, bn3))
    return x + h


if __name__ == "__main__":
    # Residual(inp=8, oup=8, stride=1, expand_ratio=2) -> hidden_dim_RB = 4
    inp, oup, stride, expand_ratio = 8, 8, 1, 2
    hidden = round(inp / expand_ratio)
    N, H, W = 2, 16, 16

    key = jax.random.PRNGKey(0)
    kx, kp = jax.random.split(key)
    x_nchw = jax.random.normal(kx, (N, inp, H, W), jnp.float32)

    torch_params = _make_params(kp, inp, oup, hidden)
    kparams = _kernel_params(torch_params, H, W)

    out = residual_forward(x_nchw, kparams)
    out = jax.block_until_ready(out)

    ref = _reference_nchw(x_nchw, torch_params)
    assert out.shape == ref.shape
    err = float(jnp.max(jnp.abs(out - ref)))
    if err > 1e-4:
        raise AssertionError(f"mismatch vs reference, max abs err = {err}")

    print("KERNEL_OK")
</pallas_src>

<mosaic_0001>
module attributes {stable_mosaic.version = 11 : i64} {
  func.func @_residual_kernel(%arg0: i32, %arg1: memref<1x8x256xf32, #tpu.memory_space<vmem>>, %arg2: memref<8x4x256xf32, #tpu.memory_space<vmem>>, %arg3: memref<4x256xf32, #tpu.memory_space<vmem>>, %arg4: memref<9x4x256xf32, #tpu.memory_space<vmem>>, %arg5: memref<4x256xf32, #tpu.memory_space<vmem>>, %arg6: memref<4x8x256xf32, #tpu.memory_space<vmem>>, %arg7: memref<8x256xf32, #tpu.memory_space<vmem>>, %arg8: memref<1x8x256xf32, #tpu.memory_space<vmem>>) attributes {dimension_semantics = [#tpu.dimension_semantics<parallel>], iteration_bounds = array<i64: 2>, scalar_prefetch = 0 : i64, scratch_operands = 0 : i64, tpu.core_type = #tpu.core_type<tc>, window_params = [{transform_indices = @transform_0, window_bounds = array<i64: 1, 8, 256>}, {pipeline_mode = #tpu.pipeline_mode<synchronous>, transform_indices = @transform_1, window_bounds = array<i64: 8, 4, 256>}, {pipeline_mode = #tpu.pipeline_mode<synchronous>, transform_indices = @transform_2, window_bounds = array<i64: 4, 256>}, {pipeline_mode = #tpu.pipeline_mode<synchronous>, transform_indices = @transform_3, window_bounds = array<i64: 9, 4, 256>}, {pipeline_mode = #tpu.pipeline_mode<synchronous>, transform_indices = @transform_4, window_bounds = array<i64: 4, 256>}, {pipeline_mode = #tpu.pipeline_mode<synchronous>, transform_indices = @transform_5, window_bounds = array<i64: 4, 8, 256>}, {pipeline_mode = #tpu.pipeline_mode<synchronous>, transform_indices = @transform_6, window_bounds = array<i64: 8, 256>}, {transform_indices = @transform_7, window_bounds = array<i64: 1, 8, 256>}]} {
    %c0 = arith.constant 0 : index
    %c0_0 = arith.constant 0 : index
    %c0_1 = arith.constant 0 : index
    %0 = vector.load %arg1[%c0, %c0_0, %c0_1] : memref<1x8x256xf32, #tpu.memory_space<vmem>>, vector<1x8x256xf32>
    %1 = vector.shape_cast %0 : vector<1x8x256xf32> to vector<8x256xf32>
    %c0_2 = arith.constant 0 : index
    %c0_3 = arith.constant 0 : index
    %2 = vector.load %arg3[%c0_2, %c0_3] : memref<4x256xf32, #tpu.memory_space<vmem>>, vector<4x256xf32>
    %c0_4 = arith.constant 0 : index
    %c0_5 = arith.constant 0 : index
    %c0_6 = arith.constant 0 : index
    %3 = vector.load %arg2[%c0_4, %c0_5, %c0_6] : memref<8x4x256xf32, #tpu.memory_space<vmem>>, vector<1x4x256xf32>
    %4 = vector.shape_cast %3 : vector<1x4x256xf32> to vector<4x256xf32>
    %5 = vector.extract_strided_slice %1 {offsets = [0, 0], sizes = [1, 256], strides = [1, 1]} : vector<8x256xf32> to vector<1x256xf32>
    %6 = vector.broadcast %5 : vector<1x256xf32> to vector<4x256xf32>
    %7 = arith.mulf %4, %6 : vector<4x256xf32>
    %8 = arith.addf %2, %7 : vector<4x256xf32>
    %c1 = arith.constant 1 : index
    %c0_7 = arith.constant 0 : index
    %c0_8 = arith.constant 0 : index
    %9 = vector.load %arg2[%c1, %c0_7, %c0_8] : memref<8x4x256xf32, #tpu.memory_space<vmem>>, vector<1x4x256xf32>
    %10 = vector.shape_cast %9 : vector<1x4x256xf32> to vector<4x256xf32>
    %11 = vector.extract_strided_slice %1 {offsets = [1, 0], sizes = [1, 256], strides = [1, 1]} : vector<8x256xf32> to vector<1x256xf32>
    %12 = vector.broadcast %11 : vector<1x256xf32> to vector<4x256xf32>
    %13 = arith.mulf %10, %12 : vector<4x256xf32>
    %14 = arith.addf %8, %13 : vector<4x256xf32>
    %c2 = arith.constant 2 : index
    %c0_9 = arith.constant 0 : index
    %c0_10 = arith.constant 0 : index
    %15 = vector.load %arg2[%c2, %c0_9, %c0_10] : memref<8x4x256xf32, #tpu.memory_space<vmem>>, vector<1x4x256xf32>
    %16 = vector.shape_cast %15 : vector<1x4x256xf32> to vector<4x256xf32>
    %17 = vector.extract_strided_slice %1 {offsets = [2, 0], sizes = [1, 256], strides = [1, 1]} : vector<8x256xf32> to vector<1x256xf32>
    %18 = vector.broadcast %17 : vector<1x256xf32> to vector<4x256xf32>
    %19 = arith.mulf %16, %18 : vector<4x256xf32>
    %20 = arith.addf %14, %19 : vector<4x256xf32>
    %c3 = arith.constant 3 : index
    %c0_11 = arith.constant 0 : index
    %c0_12 = arith.constant 0 : index
    %21 = vector.load %arg2[%c3, %c0_11, %c0_12] : memref<8x4x256xf32, #tpu.memory_space<vmem>>, vector<1x4x256xf32>
    %22 = vector.shape_cast %21 : vector<1x4x256xf32> to vector<4x256xf32>
    %23 = vector.extract_strided_slice %1 {offsets = [3, 0], sizes = [1, 256], strides = [1, 1]} : vector<8x256xf32> to vector<1x256xf32>
    %24 = vector.broadcast %23 : vector<1x256xf32> to vector<4x256xf32>
    %25 = arith.mulf %22, %24 : vector<4x256xf32>
    %26 = arith.addf %20, %25 : vector<4x256xf32>
    %c4 = arith.constant 4 : index
    %c0_13 = arith.constant 0 : index
    %c0_14 = arith.constant 0 : index
    %27 = vector.load %arg2[%c4, %c0_13, %c0_14] : memref<8x4x256xf32, #tpu.memory_space<vmem>>, vector<1x4x256xf32>
    %28 = vector.shape_cast %27 : vector<1x4x256xf32> to vector<4x256xf32>
    %29 = vector.extract_strided_slice %1 {offsets = [4, 0], sizes = [1, 256], strides = [1, 1]} : vector<8x256xf32> to vector<1x256xf32>
    %30 = vector.broadcast %29 : vector<1x256xf32> to vector<4x256xf32>
    %31 = arith.mulf %28, %30 : vector<4x256xf32>
    %32 = arith.addf %26, %31 : vector<4x256xf32>
    %c5 = arith.constant 5 : index
    %c0_15 = arith.constant 0 : index
    %c0_16 = arith.constant 0 : index
    %33 = vector.load %arg2[%c5, %c0_15, %c0_16] : memref<8x4x256xf32, #tpu.memory_space<vmem>>, vector<1x4x256xf32>
    %34 = vector.shape_cast %33 : vector<1x4x256xf32> to vector<4x256xf32>
    %35 = vector.extract_strided_slice %1 {offsets = [5, 0], sizes = [1, 256], strides = [1, 1]} : vector<8x256xf32> to vector<1x256xf32>
    %36 = vector.broadcast %35 : vector<1x256xf32> to vector<4x256xf32>
    %37 = arith.mulf %34, %36 : vector<4x256xf32>
    %38 = arith.addf %32, %37 : vector<4x256xf32>
    %c6 = arith.constant 6 : index
    %c0_17 = arith.constant 0 : index
    %c0_18 = arith.constant 0 : index
    %39 = vector.load %arg2[%c6, %c0_17, %c0_18] : memref<8x4x256xf32, #tpu.memory_space<vmem>>, vector<1x4x256xf32>
    %40 = vector.shape_cast %39 : vector<1x4x256xf32> to vector<4x256xf32>
    %41 = vector.extract_strided_slice %1 {offsets = [6, 0], sizes = [1, 256], strides = [1, 1]} : vector<8x256xf32> to vector<1x256xf32>
    %42 = vector.broadcast %41 : vector<1x256xf32> to vector<4x256xf32>
    %43 = arith.mulf %40, %42 : vector<4x256xf32>
    %44 = arith.addf %38, %43 : vector<4x256xf32>
    %c7 = arith.constant 7 : index
    %c0_19 = arith.constant 0 : index
    %c0_20 = arith.constant 0 : index
    %45 = vector.load %arg2[%c7, %c0_19, %c0_20] : memref<8x4x256xf32, #tpu.memory_space<vmem>>, vector<1x4x256xf32>
    %46 = vector.shape_cast %45 : vector<1x4x256xf32> to vector<4x256xf32>
    %47 = vector.extract_strided_slice %1 {offsets = [7, 0], sizes = [1, 256], strides = [1, 1]} : vector<8x256xf32> to vector<1x256xf32>
    %48 = vector.broadcast %47 : vector<1x256xf32> to vector<4x256xf32>
    %49 = arith.mulf %46, %48 : vector<4x256xf32>
    %50 = arith.addf %44, %49 : vector<4x256xf32>
    %cst = arith.constant 0.000000e+00 : f32
    %cst_21 = arith.constant 6.000000e+00 : f32
    %51 = vector.broadcast %cst : f32 to vector<4x256xf32>
    %52 = arith.maximumf %51, %50 : vector<4x256xf32>
    %53 = vector.broadcast %cst_21 : f32 to vector<4x256xf32>
    %54 = arith.minimumf %53, %52 : vector<4x256xf32>
    %c0_22 = arith.constant 0 : index
    %c0_23 = arith.constant 0 : index
    %55 = vector.load %arg5[%c0_22, %c0_23] : memref<4x256xf32, #tpu.memory_space<vmem>>, vector<4x256xf32>
    %c17_i32 = arith.constant 17 : i32
    %56 = tpu.dynamic_rotate %54 by %c17_i32 dim 1 : vector<4x256xf32>, i32 -> vector<4x256xf32>
    %c0_24 = arith.constant 0 : index
    %c0_25 = arith.constant 0 : index
    %c0_26 = arith.constant 0 : index
    %57 = vector.load %arg4[%c0_24, %c0_25, %c0_26] : memref<9x4x256xf32, #tpu.memory_space<vmem>>, vector<1x4x256xf32>
    %58 = vector.shape_cast %57 : vector<1x4x256xf32> to vector<4x256xf32>
    %59 = arith.mulf %58, %56 : vector<4x256xf32>
    %60 = arith.addf %55, %59 : vector<4x256xf32>
    %c16_i32 = arith.constant 16 : i32
    %61 = tpu.dynamic_rotate %54 by %c16_i32 dim 1 : vector<4x256xf32>, i32 -> vector<4x256xf32>
    %c1_27 = arith.constant 1 : index
    %c0_28 = arith.constant 0 : index
    %c0_29 = arith.constant 0 : index
    %62 = vector.load %arg4[%c1_27, %c0_28, %c0_29] : memref<9x4x256xf32, #tpu.memory_space<vmem>>, vector<1x4x256xf32>
    %63 = vector.shape_cast %62 : vector<1x4x256xf32> to vector<4x256xf32>
    %64 = arith.mulf %63, %61 : vector<4x256xf32>
    %65 = arith.addf %60, %64 : vector<4x256xf32>
    %c15_i32 = arith.constant 15 : i32
    %66 = tpu.dynamic_rotate %54 by %c15_i32 dim 1 : vector<4x256xf32>, i32 -> vector<4x256xf32>
    %c2_30 = arith.constant 2 : index
    %c0_31 = arith.constant 0 : index
    %c0_32 = arith.constant 0 : index
    %67 = vector.load %arg4[%c2_30, %c0_31, %c0_32] : memref<9x4x256xf32, #tpu.memory_space<vmem>>, vector<1x4x256xf32>
    %68 = vector.shape_cast %67 : vector<1x4x256xf32> to vector<4x256xf32>
    %69 = arith.mulf %68, %66 : vector<4x256xf32>
    %70 = arith.addf %65, %69 : vector<4x256xf32>
    %c1_i32 = arith.constant 1 : i32
    %71 = tpu.dynamic_rotate %54 by %c1_i32 dim 1 : vector<4x256xf32>, i32 -> vector<4x256xf32>
    %c3_33 = arith.constant 3 : index
    %c0_34 = arith.constant 0 : index
    %c0_35 = arith.constant 0 : index
    %72 = vector.load %arg4[%c3_33, %c0_34, %c0_35] : memref<9x4x256xf32, #tpu.memory_space<vmem>>, vector<1x4x256xf32>
    %73 = vector.shape_cast %72 : vector<1x4x256xf32> to vector<4x256xf32>
    %74 = arith.mulf %73, %71 : vector<4x256xf32>
    %75 = arith.addf %70, %74 : vector<4x256xf32>
    %c4_36 = arith.constant 4 : index
    %c0_37 = arith.constant 0 : index
    %c0_38 = arith.constant 0 : index
    %76 = vector.load %arg4[%c4_36, %c0_37, %c0_38] : memref<9x4x256xf32, #tpu.memory_space<vmem>>, vector<1x4x256xf32>
    %77 = vector.shape_cast %76 : vector<1x4x256xf32> to vector<4x256xf32>
    %78 = arith.mulf %77, %54 : vector<4x256xf32>
    %79 = arith.addf %75, %78 : vector<4x256xf32>
    %c255_i32 = arith.constant 255 : i32
    %80 = tpu.dynamic_rotate %54 by %c255_i32 dim 1 : vector<4x256xf32>, i32 -> vector<4x256xf32>
    %c5_39 = arith.constant 5 : index
    %c0_40 = arith.constant 0 : index
    %c0_41 = arith.constant 0 : index
    %81 = vector.load %arg4[%c5_39, %c0_40, %c0_41] : memref<9x4x256xf32, #tpu.memory_space<vmem>>, vector<1x4x256xf32>
    %82 = vector.shape_cast %81 : vector<1x4x256xf32> to vector<4x256xf32>
    %83 = arith.mulf %82, %80 : vector<4x256xf32>
    %84 = arith.addf %79, %83 : vector<4x256xf32>
    %c241_i32 = arith.constant 241 : i32
    %85 = tpu.dynamic_rotate %54 by %c241_i32 dim 1 : vector<4x256xf32>, i32 -> vector<4x256xf32>
    %c6_42 = arith.constant 6 : index
    %c0_43 = arith.constant 0 : index
    %c0_44 = arith.constant 0 : index
    %86 = vector.load %arg4[%c6_42, %c0_43, %c0_44] : memref<9x4x256xf32, #tpu.memory_space<vmem>>, vector<1x4x256xf32>
    %87 = vector.shape_cast %86 : vector<1x4x256xf32> to vector<4x256xf32>
    %88 = arith.mulf %87, %85 : vector<4x256xf32>
    %89 = arith.addf %84, %88 : vector<4x256xf32>
    %c240_i32 = arith.constant 240 : i32
    %90 = tpu.dynamic_rotate %54 by %c240_i32 dim 1 : vector<4x256xf32>, i32 -> vector<4x256xf32>
    %c7_45 = arith.constant 7 : index
    %c0_46 = arith.constant 0 : index
    %c0_47 = arith.constant 0 : index
    %91 = vector.load %arg4[%c7_45, %c0_46, %c0_47] : memref<9x4x256xf32, #tpu.memory_space<vmem>>, vector<1x4x256xf32>
    %92 = vector.shape_cast %91 : vector<1x4x256xf32> to vector<4x256xf32>
    %93 = arith.mulf %92, %90 : vector<4x256xf32>
    %94 = arith.addf %89, %93 : vector<4x256xf32>
    %c239_i32 = arith.constant 239 : i32
    %95 = tpu.dynamic_rotate %54 by %c239_i32 dim 1 : vector<4x256xf32>, i32 -> vector<4x256xf32>
    %c8 = arith.constant 8 : index
    %c0_48 = arith.constant 0 : index
    %c0_49 = arith.constant 0 : index
    %96 = vector.load %arg4[%c8, %c0_48, %c0_49] : memref<9x4x256xf32, #tpu.memory_space<vmem>>, vector<1x4x256xf32>
    %97 = vector.shape_cast %96 : vector<1x4x256xf32> to vector<4x256xf32>
    %98 = arith.mulf %97, %95 : vector<4x256xf32>
    %99 = arith.addf %94, %98 : vector<4x256xf32>
    %cst_50 = arith.constant 0.000000e+00 : f32
    %cst_51 = arith.constant 6.000000e+00 : f32
    %100 = vector.broadcast %cst_50 : f32 to vector<4x256xf32>
    %101 = arith.maximumf %100, %99 : vector<4x256xf32>
    %102 = vector.broadcast %cst_51 : f32 to vector<4x256xf32>
    %103 = arith.minimumf %102, %101 : vector<4x256xf32>
    %c0_52 = arith.constant 0 : index
    %c0_53 = arith.constant 0 : index
    %104 = vector.load %arg7[%c0_52, %c0_53] : memref<8x256xf32, #tpu.memory_space<vmem>>, vector<8x256xf32>
    %c0_54 = arith.constant 0 : index
    %c0_55 = arith.constant 0 : index
    %c0_56 = arith.constant 0 : index
    %105 = vector.load %arg6[%c0_54, %c0_55, %c0_56] : memref<4x8x256xf32, #tpu.memory_space<vmem>>, vector<1x8x256xf32>
    %106 = vector.shape_cast %105 : vector<1x8x256xf32> to vector<8x256xf32>
    %107 = vector.extract_strided_slice %103 {offsets = [0, 0], sizes = [1, 256], strides = [1, 1]} : vector<4x256xf32> to vector<1x256xf32>
    %108 = vector.broadcast %107 : vector<1x256xf32> to vector<8x256xf32>
    %109 = arith.mulf %106, %108 : vector<8x256xf32>
    %110 = arith.addf %104, %109 : vector<8x256xf32>
    %c1_57 = arith.constant 1 : index
    %c0_58 = arith.constant 0 : index
    %c0_59 = arith.constant 0 : index
    %111 = vector.load %arg6[%c1_57, %c0_58, %c0_59] : memref<4x8x256xf32, #tpu.memory_space<vmem>>, vector<1x8x256xf32>
    %112 = vector.shape_cast %111 : vector<1x8x256xf32> to vector<8x256xf32>
    %113 = vector.extract_strided_slice %103 {offsets = [1, 0], sizes = [1, 256], strides = [1, 1]} : vector<4x256xf32> to vector<1x256xf32>
    %114 = vector.broadcast %113 : vector<1x256xf32> to vector<8x256xf32>
    %115 = arith.mulf %112, %114 : vector<8x256xf32>
    %116 = arith.addf %110, %115 : vector<8x256xf32>
    %c2_60 = arith.constant 2 : index
    %c0_61 = arith.constant 0 : index
    %c0_62 = arith.constant 0 : index
    %117 = vector.load %arg6[%c2_60, %c0_61, %c0_62] : memref<4x8x256xf32, #tpu.memory_space<vmem>>, vector<1x8x256xf32>
    %118 = vector.shape_cast %117 : vector<1x8x256xf32> to vector<8x256xf32>
    %119 = vector.extract_strided_slice %103 {offsets = [2, 0], sizes = [1, 256], strides = [1, 1]} : vector<4x256xf32> to vector<1x256xf32>
    %120 = vector.broadcast %119 : vector<1x256xf32> to vector<8x256xf32>
    %121 = arith.mulf %118, %120 : vector<8x256xf32>
    %122 = arith.addf %116, %121 : vector<8x256xf32>
    %c3_63 = arith.constant 3 : index
    %c0_64 = arith.constant 0 : index
    %c0_65 = arith.constant 0 : index
    %123 = vector.load %arg6[%c3_63, %c0_64, %c0_65] : memref<4x8x256xf32, #tpu.memory_space<vmem>>, vector<1x8x256xf32>
    %124 = vector.shape_cast %123 : vector<1x8x256xf32> to vector<8x256xf32>
    %125 = vector.extract_strided_slice %103 {offsets = [3, 0], sizes = [1, 256], strides = [1, 1]} : vector<4x256xf32> to vector<1x256xf32>
    %126 = vector.broadcast %125 : vector<1x256xf32> to vector<8x256xf32>
    %127 = arith.mulf %124, %126 : vector<8x256xf32>
    %128 = arith.addf %122, %127 : vector<8x256xf32>
    %cst_66 = arith.constant 0.000000e+00 : f32
    %cst_67 = arith.constant 6.000000e+00 : f32
    %129 = vector.broadcast %cst_66 : f32 to vector<8x256xf32>
    %130 = arith.maximumf %129, %128 : vector<8x256xf32>
    %131 = vector.broadcast %cst_67 : f32 to vector<8x256xf32>
    %132 = arith.minimumf %131, %130 : vector<8x256xf32>
    %133 = arith.addf %1, %132 : vector<8x256xf32>
    %c0_68 = arith.constant 0 : index
    %c0_69 = arith.constant 0 : index
    %c0_70 = arith.constant 0 : index
    %134 = vector.load %arg8[%c0_68, %c0_69, %c0_70] : memref<1x8x256xf32, #tpu.memory_space<vmem>>, vector<1x8x256xf32>
    %135 = vector.shape_cast %134 : vector<1x8x256xf32> to vector<8x256xf32>
    %136 = vector.shape_cast %133 : vector<8x256xf32> to vector<1x8x256xf32>
    tpu.vector_store %arg8[%c0_68, %c0_69, %c0_70], %136 {strides = array<i32>} : memref<1x8x256xf32, #tpu.memory_space<vmem>>, vector<1x8x256xf32>,
    return
  }
  func.func @transform_0(%arg0: i32) -> (i32, i32, i32) {
    %c0_i32 = arith.constant 0 : i32
    %c0_i32_0 = arith.constant 0 : i32
    %c0_i32_1 = arith.constant 0 : i32
    return %arg0, %c0_i32, %c0_i32_0 : i32, i32, i32
  }
  func.func @transform_1(%arg0: i32) -> (i32, i32, i32) {
    %c0_i32 = arith.constant 0 : i32
    %c0_i32_0 = arith.constant 0 : i32
    %c0_i32_1 = arith.constant 0 : i32
    %c0_i32_2 = arith.constant 0 : i32
    return %c0_i32, %c0_i32_0, %c0_i32_1 : i32, i32, i32
  }
  func.func @transform_2(%arg0: i32) -> (i32, i32) {
    %c0_i32 = arith.constant 0 : i32
    %c0_i32_0 = arith.constant 0 : i32
    %c0_i32_1 = arith.constant 0 : i32
    return %c0_i32, %c0_i32_0 : i32, i32
  }
  func.func @transform_3(%arg0: i32) -> (i32, i32, i32) {
    %c0_i32 = arith.constant 0 : i32
    %c0_i32_0 = arith.constant 0 : i32
    %c0_i32_1 = arith.constant 0 : i32
    %c0_i32_2 = arith.constant 0 : i32
    return %c0_i32, %c0_i32_0, %c0_i32_1 : i32, i32, i32
  }
  func.func @transform_4(%arg0: i32) -> (i32, i32) {
    %c0_i32 = arith.constant 0 : i32
    %c0_i32_0 = arith.constant 0 : i32
    %c0_i32_1 = arith.constant 0 : i32
    return %c0_i32, %c0_i32_0 : i32, i32
  }
  func.func @transform_5(%arg0: i32) -> (i32, i32, i32) {
    %c0_i32 = arith.constant 0 : i32
    %c0_i32_0 = arith.constant 0 : i32
    %c0_i32_1 = arith.constant 0 : i32
    %c0_i32_2 = arith.constant 0 : i32
    return %c0_i32, %c0_i32_0, %c0_i32_1 : i32, i32, i32
  }
  func.func @transform_6(%arg0: i32) -> (i32, i32) {
    %c0_i32 = arith.constant 0 : i32
    %c0_i32_0 = arith.constant 0 : i32
    %c0_i32_1 = arith.constant 0 : i32
    return %c0_i32, %c0_i32_0 : i32, i32
  }
  func.func @transform_7(%arg0: i32) -> (i32, i32, i32) {
    %c0_i32 = arith.constant 0 : i32
    %c0_i32_0 = arith.constant 0 : i32
    %c0_i32_1 = arith.constant 0 : i32
    return %arg0, %c0_i32, %c0_i32_0 : i32, i32, i32
  }
}

</mosaic_0001>

<llo_original>
// kernel: tpu_custom_call.1
$region0: #{tpu_custom_call.1}
  #allocation0 [shape = 'u32[]', space=smem, size = 0x4, offset = 0x4, fixed_abs, tag = 'smem constant byte address 0x4 - core index']
  #allocation1 [shape = 'u32[72,128]{1,0:T(1,128)}', space=vmem, size = 0x9000, scoped, tag = 'internal scratch']
  %s0 = inlined_call_operand.hbm [shape: f32[2,8,256], index: 0, kind: input, shape index: {}]
  %s1 = inlined_call_operand.hbm [shape: f32[8,4,256], index: 1, kind: input, shape index: {}]
  %s2 = inlined_call_operand.hbm [shape: f32[4,256], index: 2, kind: input, shape index: {}]
  %s3 = inlined_call_operand.hbm [shape: f32[9,4,256], index: 3, kind: input, shape index: {}]
  %s4 = inlined_call_operand.hbm [shape: f32[4,256], index: 4, kind: input, shape index: {}]
  %s5 = inlined_call_operand.hbm [shape: f32[4,8,256], index: 5, kind: input, shape index: {}]
  %s6 = inlined_call_operand.hbm [shape: f32[8,256], index: 6, kind: input, shape index: {}]
  %s7 = inlined_call_operand.hbm [shape: f32[2,8,256], index: 7, kind: output, shape index: {}]
  %s8 = sld [smem:[#allocation0]]
  $region89: #{tpu_custom_call.1} parent=0
    _
  %s10 = ssub.s32 1, %s8
  %s11 = scalar_select 0, %s10, %s8
  $region1: #{tpu_custom_call.1} parent=0
    #allocation2 [shape = 'u8[16384]{0}', space=vmem, size = 0x4000, scoped, tag = 'input window, operand 0']
    #allocation3 [shape = 's32[2]{0}', space=sflag, size = 0x8, scoped, tag = 'scoped memory for tpu_custom_call.1']
    #allocation4 [shape = 's32[2]{0}', space=sflag, size = 0x8, scoped, tag = 'scoped memory for tpu_custom_call.1']
    #allocation5 [shape = 'u8[32768]{0}', space=vmem, size = 0x8000, scoped, tag = 'input window, operand 1, single buffered']
    #allocation6 [shape = 's32[1]{0}', space=sflag, size = 0x4, scoped, tag = 'scoped memory for tpu_custom_call.1']
    #allocation7 [shape = 'u8[4096]{0}', space=vmem, size = 0x1000, scoped, tag = 'input window, operand 2, single buffered']
    #allocation8 [shape = 'u8[36864]{0}', space=vmem, size = 0x9000, scoped, tag = 'input window, operand 3, single buffered']
    #allocation9 [shape = 's32[1]{0}', space=sflag, size = 0x4, scoped, tag = 'scoped memory for tpu_custom_call.1']
    #allocation10 [shape = 'u8[4096]{0}', space=vmem, size = 0x1000, scoped, tag = 'input window, operand 4, single buffered']
    #allocation11 [shape = 'u8[32768]{0}', space=vmem, size = 0x8000, scoped, tag = 'input window, operand 5, single buffered']
    #allocation12 [shape = 's32[1]{0}', space=sflag, size = 0x4, scoped, tag = 'scoped memory for tpu_custom_call.1']
    #allocation13 [shape = 'u8[8192]{0}', space=vmem, size = 0x2000, scoped, tag = 'input window, operand 6, single buffered']
    #allocation14 [shape = 'u8[16384]{0}', space=vmem, size = 0x4000, scoped, tag = 'output window, operand 0']
    %12 = vsyncpa [#allocation3], 0
    %s13 = scalar_lea.sflag [#allocation3], 1
    %14 = vsyncpa %s13, 0
    %15 = vsyncpa [#allocation6], 0
    %16 = vsyncpa [#allocation9], 0
    %17 = vsyncpa [#allocation12], 0
    %18 = vsyncpa [#allocation4], 0
    %s19 = scalar_lea.sflag [#allocation4], 1
    %20 = vsyncpa %s19, 0
    loop: start=0, step=1, limit=4
    $region2: #{tpu_custom_call.1} parent=1 // loop_pre_header
      _
    $region3: #{tpu_custom_call.1} parent=1 // loop_header
      %s22 = sphi 0, %s26
      %p23 = scmp.ge.s32.totalorder %s22, 4
      %s32 = sphi 0, %s34
      %s35 = sphi 0, %s32
      %s36 = sphi 0, %s35
      %s52 = sphi 0, %s36
      %s56 = sphi 0, %s56
      %s58 = sphi 0, %s56
      %s59 = sphi 0, %s58
      %s73 = sphi 0, %s59
      %s77 = sphi 0, %s77
      %s79 = sphi 0, %s77
      %s80 = sphi 0, %s79
      %s94 = sphi 0, %s80
      %s98 = sphi 0, %s98
      %s100 = sphi 0, %s98
      %s101 = sphi 0, %s100
      %s115 = sphi 0, %s101
      %s119 = sphi 0, %s119
      %s121 = sphi 0, %s119
      %s122 = sphi 0, %s121
      %s136 = sphi 0, %s122
      %s140 = sphi 0, %s140
      %s142 = sphi 0, %s140
      %s143 = sphi 0, %s142
      %s157 = sphi 0, %s143
      %s161 = sphi 0, %s161
      %s163 = sphi 0, %s161
      %s164 = sphi 0, %s163
      %s178 = sphi 0, %s164
      %s184 = sphi 0, %s186
      %s187 = sphi 0, %s184
      %s188 = sphi 0, %s187
      %s204 = sphi 0, %s188
    $region4: #{tpu_custom_call.1} parent=1 // loop_header_branch
      %25 = sbr.rel (%p23) target = $region8
    $region5: #{tpu_custom_call.1} parent=1 // loop_body
      %s27 = ssub.s32 %s22, 1
      %s28 = ssub.s32 %s22, 2
      %s29 = sadd.s32 %s22, 1
      %s30 = ssub.s32 %s22, %s29
      %p31 = scmp.eq.s32.totalorder %s30, 0
      %s33 = sadd.s32 %s32, 1
      %s34 = scalar_select %p31, %s32, %s33
      %p37 = pneg %p31
      %p38 = scmp.eq.s32.totalorder %s22, 1
      %p39 = por %p37, %p38
      %p40 = scmp.ne.s32.totalorder %s32, %s35
      %p41 = scmp.eq.s32.totalorder %s22, 0
      %p42 = por %p40, %p41
      %p43 = scmp.ne.s32.totalorder %s32, %s35
      %p44 = scmp.eq.s32.totalorder %s27, 1
      %p45 = por %p43, %p44
      %p46 = scmp.ne.s32.totalorder %s35, %s36
      %p47 = scmp.eq.s32.totalorder %s27, 0
      %p48 = por %p46, %p47
      %p49 = scmp.ne.s32.totalorder %s35, %s36
      %p50 = scmp.eq.s32.totalorder %s28, 1
      %p51 = por %p49, %p50
      %p53 = scmp.ne.s32.totalorder %s36, %s52
      %p54 = scmp.eq.s32.totalorder %s28, 0
      %p55 = por %p53, %p54
      %s57 = sadd.s32 %s56, 1
      %p60 = scmp.eq.s32.totalorder %s22, 1
      %p61 = scmp.ne.s32.totalorder %s56, %s58
      %p62 = scmp.eq.s32.totalorder %s22, 0
      %p63 = por %p61, %p62
      %p64 = scmp.ne.s32.totalorder %s56, %s58
      %p65 = scmp.eq.s32.totalorder %s27, 1
      %p66 = por %p64, %p65
      %p67 = scmp.ne.s32.totalorder %s58, %s59
      %p68 = scmp.eq.s32.totalorder %s27, 0
      %p69 = por %p67, %p68
      %p70 = scmp.ne.s32.totalorder %s58, %s59
      %p71 = scmp.eq.s32.totalorder %s28, 1
      %p72 = por %p70, %p71
      %p74 = scmp.ne.s32.totalorder %s59, %s73
      %p75 = scmp.eq.s32.totalorder %s28, 0
      %p76 = por %p74, %p75
      %s78 = sadd.s32 %s77, 1
      %p81 = scmp.eq.s32.totalorder %s22, 1
      %p82 = scmp.ne.s32.totalorder %s77, %s79
      %p83 = scmp.eq.s32.totalorder %s22, 0
      %p84 = por %p82, %p83
      %p85 = scmp.ne.s32.totalorder %s77, %s79
      %p86 = scmp.eq.s32.totalorder %s27, 1
      %p87 = por %p85, %p86
      %p88 = scmp.ne.s32.totalorder %s79, %s80
      %p89 = scmp.eq.s32.totalorder %s27, 0
      %p90 = por %p88, %p89
      %p91 = scmp.ne.s32.totalorder %s79, %s80
      %p92 = scmp.eq.s32.totalorder %s28, 1
      %p93 = por %p91, %p92
      %p95 = scmp.ne.s32.totalorder %s80, %s94
      %p96 = scmp.eq.s32.totalorder %s28, 0
      %p97 = por %p95, %p96
      %s99 = sadd.s32 %s98, 1
      %p102 = scmp.eq.s32.totalorder %s22, 1
      %p103 = scmp.ne.s32.totalorder %s98, %s100
      %p104 = scmp.eq.s32.totalorder %s22, 0
      %p105 = por %p103, %p104
      %p106 = scmp.ne.s32.totalorder %s98, %s100
      %p107 = scmp.eq.s32.totalorder %s27, 1
      %p108 = por %p106, %p107
      %p109 = scmp.ne.s32.totalorder %s100, %s101
      %p110 = scmp.eq.s32.totalorder %s27, 0
      %p111 = por %p109, %p110
      %p112 = scmp.ne.s32.totalorder %s100, %s101
      %p113 = scmp.eq.s32.totalorder %s28, 1
      %p114 = por %p112, %p113
      %p116 = scmp.ne.s32.totalorder %s101, %s115
      %p117 = scmp.eq.s32.totalorder %s28, 0
      %p118 = por %p116, %p117
      %s120 = sadd.s32 %s119, 1
      %p123 = scmp.eq.s32.totalorder %s22, 1
      %p124 = scmp.ne.s32.totalorder %s119, %s121
      %p125 = scmp.eq.s32.totalorder %s22, 0
      %p126 = por %p124, %p125
      %p127 = scmp.ne.s32.totalorder %s119, %s121
      %p128 = scmp.eq.s32.totalorder %s27, 1
      %p129 = por %p127, %p128
      %p130 = scmp.ne.s32.totalorder %s121, %s122
      %p131 = scmp.eq.s32.totalorder %s27, 0
      %p132 = por %p130, %p131
      %p133 = scmp.ne.s32.totalorder %s121, %s122
      %p134 = scmp.eq.s32.totalorder %s28, 1
      %p135 = por %p133, %p134
      %p137 = scmp.ne.s32.totalorder %s122, %s136
      %p138 = scmp.eq.s32.totalorder %s28, 0
      %p139 = por %p137, %p138
      %s141 = sadd.s32 %s140, 1
      %p144 = scmp.eq.s32.totalorder %s22, 1
      %p145 = scmp.ne.s32.totalorder %s140, %s142
      %p146 = scmp.eq.s32.totalorder %s22, 0
      %p147 = por %p145, %p146
      %p148 = scmp.ne.s32.totalorder %s140, %s142
      %p149 = scmp.eq.s32.totalorder %s27, 1
      %p150 = por %p148, %p149
      %p151 = scmp.ne.s32.totalorder %s142, %s143
      %p152 = scmp.eq.s32.totalorder %s27, 0
      %p153 = por %p151, %p152
      %p154 = scmp.ne.s32.totalorder %s142, %s143
      %p155 = scmp.eq.s32.totalorder %s28, 1
      %p156 = por %p154, %p155
      %p158 = scmp.ne.s32.totalorder %s143, %s157
      %p159 = scmp.eq.s32.totalorder %s28, 0
      %p160 = por %p158, %p159
      %s162 = sadd.s32 %s161, 1
      %p165 = scmp.eq.s32.totalorder %s22, 1
      %p166 = scmp.ne.s32.totalorder %s161, %s163
      %p167 = scmp.eq.s32.totalorder %s22, 0
      %p168 = por %p166, %p167
      %p169 = scmp.ne.s32.totalorder %s161, %s163
      %p170 = scmp.eq.s32.totalorder %s27, 1
      %p171 = por %p169, %p170
      %p172 = scmp.ne.s32.totalorder %s163, %s164
      %p173 = scmp.eq.s32.totalorder %s27, 0
      %p174 = por %p172, %p173
      %p175 = scmp.ne.s32.totalorder %s163, %s164
      %p176 = scmp.eq.s32.totalorder %s28, 1
      %p177 = por %p175, %p176
      %p179 = scmp.ne.s32.totalorder %s164, %s178
      %p180 = scmp.eq.s32.totalorder %s28, 0
      %p181 = por %p179, %p180
      %s182 = ssub.s32 %s22, %s29
      %p183 = scmp.eq.s32.totalorder %s182, 0
      %s185 = sadd.s32 %s184, 1
      %s186 = scalar_select %p183, %s184, %s185
      %p189 = pneg %p183
      %p190 = scmp.eq.s32.totalorder %s22, 1
      %p191 = por %p189, %p190
      %p192 = scmp.ne.s32.totalorder %s184, %s187
      %p193 = scmp.eq.s32.totalorder %s22, 0
      %p194 = por %p192, %p193
      %p195 = scmp.ne.s32.totalorder %s184, %s187
      %p196 = scmp.eq.s32.totalorder %s27, 1
      %p197 = por %p195, %p196
      %p198 = scmp.ne.s32.totalorder %s187, %s188
      %p199 = scmp.eq.s32.totalorder %s27, 0
      %p200 = por %p198, %p199
      %p201 = scmp.ne.s32.totalorder %s187, %s188
      %p202 = scmp.eq.s32.totalorder %s28, 1
      %p203 = por %p201, %p202
      %p205 = scmp.ne.s32.totalorder %s188, %s204
      %p206 = scmp.eq.s32.totalorder %s28, 0
      %p207 = por %p205, %p206
      %p208 = scmp.le.s32.totalorder 1, %s22
      %p209 = scmp.lt.s32.totalorder %s22, 3
      %p210 = pnand %p208, %p209
      %p211 = pneg %p210
      // Predicated region
      $region9: #{tpu_custom_call.1} parent=5 // pred_check
        _
      $region10: #{tpu_custom_call.1} parent=5 // pred_check_branch
        %213 = sbr.rel (%p210) target = $region12
      $region11: #{tpu_custom_call.1} parent=5 // pred_region
        %s214 = ssub.s32 %s22, 1
        // Predicated region
        $region13: #{tpu_custom_call.1} parent=11 // pred_check
          %p215 = pneg %p69
        $region14: #{tpu_custom_call.1} parent=11 // pred_check_branch
          %217 = sbr.rel (%p215) target = $region16
        $region15: #{tpu_custom_call.1} parent=11 // pred_region
          %219 = vsyncadd [#allocation6], 0
          %s220 = sshll.u32 %s1, 4
          %s221 = int_to_ptr.hbm [resolvable:$true] %s220
          %s222 = sshll.u32 [#allocation5], 4
          %s223 = int_to_ptr.vmem [resolvable:$true] %s222
          %228 = dma.hbm_to_vmem [thread:$0]  %s221, 1024, %s223, [#allocation6], 128, 128, 8
        $region16: #{tpu_custom_call.1} parent=11 // pred_fallthru
          _
        // Predicated region
        $region17: #{tpu_custom_call.1} parent=11 // pred_check
          %p229 = pneg %p90
        $region18: #{tpu_custom_call.1} parent=11 // pred_check_branch
          %231 = sbr.rel (%p229) target = $region20
        $region19: #{tpu_custom_call.1} parent=11 // pred_region
          %233 = vsyncadd [#allocation6], 0
          %s235 = sshll.u32 %s2, 4
          %s236 = int_to_ptr.hbm [resolvable:$true] %s235
          %s237 = sshll.u32 [#allocation7], 4
          %s238 = int_to_ptr.vmem [resolvable:$true] %s237
          %240 = dma.hbm_to_vmem [thread:$0]  %s236, 128, %s238, [#allocation6]
        $region20: #{tpu_custom_call.1} parent=11 // pred_fallthru
          _
        // Predicated region
        $region21: #{tpu_custom_call.1} parent=11 // pred_check
          %p241 = pneg %p111
        $region22: #{tpu_custom_call.1} parent=11 // pred_check_branch
          %243 = sbr.rel (%p241) target = $region24
        $region23: #{tpu_custom_call.1} parent=11 // pred_region
          %245 = vsyncadd [#allocation9], 0
          %s246 = sshll.u32 %s3, 4
          %s247 = int_to_ptr.hbm [resolvable:$true] %s246
          %s248 = sshll.u32 [#allocation8], 4
          %s249 = int_to_ptr.vmem [resolvable:$true] %s248
          %254 = dma.hbm_to_vmem [thread:$0]  %s247, 1152, %s249, [#allocation9], 128, 128, 8
        $region24: #{tpu_custom_call.1} parent=11 // pred_fallthru
          _
        // Predicated region
        $region25: #{tpu_custom_call.1} parent=11 // pred_check
          %p255 = pneg %p132
        $region26: #{tpu_custom_call.1} parent=11 // pred_check_branch
          %257 = sbr.rel (%p255) target = $region28
        $region27: #{tpu_custom_call.1} parent=11 // pred_region
          %259 = vsyncadd [#allocation9], 0
          %s261 = sshll.u32 %s4, 4
          %s262 = int_to_ptr.hbm [resolvable:$true] %s261
          %s263 = sshll.u32 [#allocation10], 4
          %s264 = int_to_ptr.vmem [resolvable:$true] %s263
          %266 = dma.hbm_to_vmem [thread:$0]  %s262, 128, %s264, [#allocation9]
        $region28: #{tpu_custom_call.1} parent=11 // pred_fallthru
          _
        // Predicated region
        $region29: #{tpu_custom_call.1} parent=11 // pred_check
          %p267 = pneg %p153
        $region30: #{tpu_custom_call.1} parent=11 // pred_check_branch
          %269 = sbr.rel (%p267) target = $region32
        $region31: #{tpu_custom_call.1} parent=11 // pred_region
          %271 = vsyncadd [#allocation12], 0
          %s272 = sshll.u32 %s5, 4
          %s273 = int_to_ptr.hbm [resolvable:$true] %s272
          %s274 = sshll.u32 [#allocation11], 4
          %s275 = int_to_ptr.vmem [resolvable:$true] %s274
          %280 = dma.hbm_to_vmem [thread:$0]  %s273, 1024, %s275, [#allocation12], 256, 256, 16
        $region32: #{tpu_custom_call.1} parent=11 // pred_fallthru
          _
        // Predicated region
        $region33: #{tpu_custom_call.1} parent=11 // pred_check
          %p281 = pneg %p174
        $region34: #{tpu_custom_call.1} parent=11 // pred_check_branch
          %283 = sbr.rel (%p281) target = $region36
        $region35: #{tpu_custom_call.1} parent=11 // pred_region
          %285 = vsyncadd [#allocation12], 0
          %s287 = sshll.u32 %s6, 4
          %s288 = int_to_ptr.hbm [resolvable:$true] %s287
          %s289 = sshll.u32 [#allocation13], 4
          %s290 = int_to_ptr.vmem [resolvable:$true] %s289
          %292 = dma.hbm_to_vmem [thread:$0]  %s288, 256, %s290, [#allocation12]
        $region36: #{tpu_custom_call.1} parent=11 // pred_fallthru
          _
      $region12: #{tpu_custom_call.1} parent=5 // pred_fallthru
        _
      %p293 = scmp.lt.s32.totalorder %s22, 2
      // Predicated region
      $region37: #{tpu_custom_call.1} parent=5 // pred_check
        %p294 = pneg %p293
      $region38: #{tpu_custom_call.1} parent=5 // pred_check_branch
        %296 = sbr.rel (%p294) target = $region40
      $region39: #{tpu_custom_call.1} parent=5 // pred_region
        // Predicated region
        $region41: #{tpu_custom_call.1} parent=39 // pred_check
          %p297 = pneg %p42
        $region42: #{tpu_custom_call.1} parent=39 // pred_check_branch
          %299 = sbr.rel (%p297) target = $region44
        $region43: #{tpu_custom_call.1} parent=39 // pred_region
          %s300 = sand.u32 %s32, 1
          %s301 = scalar_lea.sflag [#allocation3], %s300
          %s302 = sand.u32 %s32, 1
          %s303 = smul.addr %s302, 16
          %s304 = scalar_lea.vmem [#allocation2], %s303
          %306 = vsyncadd %s301, 0
          %s307 = smul.addr %s22, 2
          %s308 = smul.addr %s307, 8
          %s309 = scalar_lea.hbm %s0, %s308
          %s311 = sshll.u32 %s309, 4
          %s312 = int_to_ptr.hbm [resolvable:$true] %s311
          %s313 = sshll.u32 %s304, 4
          %s314 = int_to_ptr.vmem [resolvable:$true] %s313
          %316 = dma.hbm_to_vmem [thread:$0]  %s312, 256, %s314, %s301
        $region44: #{tpu_custom_call.1} parent=39 // pred_fallthru
          _
      $region40: #{tpu_custom_call.1} parent=5 // pred_fallthru
        _
      %p317 = scmp.le.s32.totalorder 1, %s22
      %p318 = scmp.lt.s32.totalorder %s22, 3
      %p319 = pnand %p317, %p318
      %p320 = pneg %p319
      // Predicated region
      $region45: #{tpu_custom_call.1} parent=5 // pred_check
        _
      $region46: #{tpu_custom_call.1} parent=5 // pred_check_branch
        %322 = sbr.rel (%p319) target = $region48
      $region47: #{tpu_custom_call.1} parent=5 // pred_region
        %s323 = ssub.s32 %s22, 1
        %s324 = sand.u32 %s35, 1
        %s325 = scalar_lea.sflag [#allocation3], %s324
        %s326 = sand.u32 %s35, 1
        %s327 = smul.addr %s326, 16
        %s328 = scalar_lea.vmem [#allocation2], %s327
        // Predicated region
        $region49: #{tpu_custom_call.1} parent=47 // pred_check
          %p329 = pneg %p48
        $region50: #{tpu_custom_call.1} parent=47 // pred_check_branch
          %331 = sbr.rel (%p329) target = $region52
        $region51: #{tpu_custom_call.1} parent=47 // pred_region
          %333 = dma.done %s325, 256
        $region52: #{tpu_custom_call.1} parent=47 // pred_fallthru
          _
        // Predicated region
        $region53: #{tpu_custom_call.1} parent=47 // pred_check
          %p334 = pneg %p69
        $region54: #{tpu_custom_call.1} parent=47 // pred_check_branch
          %336 = sbr.rel (%p334) target = $region56
        $region55: #{tpu_custom_call.1} parent=47 // pred_region
          %338 = dma.done [#allocation6], 1024
        $region56: #{tpu_custom_call.1} parent=47 // pred_fallthru
          _
        // Predicated region
        $region57: #{tpu_custom_call.1} parent=47 // pred_check
          %p339 = pneg %p90
        $region58: #{tpu_custom_call.1} parent=47 // pred_check_branch
          %341 = sbr.rel (%p339) target = $region60
        $region59: #{tpu_custom_call.1} parent=47 // pred_region
          %343 = dma.done [#allocation6], 128
        $region60: #{tpu_custom_call.1} parent=47 // pred_fallthru
          _
        // Predicated region
        $region61: #{tpu_custom_call.1} parent=47 // pred_check
          %p344 = pneg %p111
        $region62: #{tpu_custom_call.1} parent=47 // pred_check_branch
          %346 = sbr.rel (%p344) target = $region64
        $region63: #{tpu_custom_call.1} parent=47 // pred_region
          %348 = dma.done [#allocation9], 1152
        $region64: #{tpu_custom_call.1} parent=47 // pred_fallthru
          _
        // Predicated region
        $region65: #{tpu_custom_call.1} parent=47 // pred_check
          %p349 = pneg %p132
        $region66: #{tpu_custom_call.1} parent=47 // pred_check_branch
          %351 = sbr.rel (%p349) target = $region68
        $region67: #{tpu_custom_call.1} parent=47 // pred_region
          %353 = dma.done [#allocation9], 128
        $region68: #{tpu_custom_call.1} parent=47 // pred_fallthru
          _
        // Predicated region
        $region69: #{tpu_custom_call.1} parent=47 // pred_check
          %p354 = pneg %p153
        $region70: #{tpu_custom_call.1} parent=47 // pred_check_branch
          %356 = sbr.rel (%p354) target = $region72
        $region71: #{tpu_custom_call.1} parent=47 // pred_region
          %358 = dma.done [#allocation12], 1024
        $region72: #{tpu_custom_call.1} parent=47 // pred_fallthru
          _
        // Predicated region
        $region73: #{tpu_custom_call.1} parent=47 // pred_check
          %p359 = pneg %p174
        $region74: #{tpu_custom_call.1} parent=47 // pred_check_branch
          %361 = sbr.rel (%p359) target = $region76
        $region75: #{tpu_custom_call.1} parent=47 // pred_region
          %363 = dma.done [#allocation12], 256
        $region76: #{tpu_custom_call.1} parent=47 // pred_fallthru
          _
        %s364 = sand.u32 %s35, 1
        %s365 = scalar_lea.sflag [#allocation3], %s364
        %s366 = sand.u32 %s35, 1
        %s367 = smul.addr %s366, 16
        %s368 = scalar_lea.vmem [#allocation2], %s367
        %p369 = pneg %p48
        %p370 = pneg %p45
        %p371 = pneg %p69
        %p372 = pneg %p66
        %p373 = pneg %p90
        %p374 = pneg %p87
        %p375 = pneg %p111
        %p376 = pneg %p108
        %p377 = pneg %p132
        %p378 = pneg %p129
        %p379 = pneg %p153
        %p380 = pneg %p150
        %p381 = pneg %p174
        %p382 = pneg %p171
        %p383 = pneg %p200
        %p384 = pneg %p197
        %s385 = sand.u32 %s187, 1
        %s386 = scalar_lea.sflag [#allocation4], %s385
        %s387 = sand.u32 %s187, 1
        %s388 = smul.addr %s387, 16
        %s389 = scalar_lea.vmem [#allocation14], %s388
        %v390 = vld [vmem:[%s328] sm:$0xff]
        %v391 = vld [vmem:[%s328 + $0x8] sm:$0xff]
        %v392 = vld [vmem:[#allocation7] sm:$0xff]
        %v393 = vld [vmem:[#allocation5] sm:$0xff]
        %v394 = vperm.slane %v390, 0
        %v395 = vperm.slane %v391, 0
        %v398 = vrot.slane %v395, 4
        %vm399 = vcmask 1043456
        %v400 = vsel %vm399, %v394, %v398
        %v402 = vmul.f32 %v393, %v400
        %v403 = vadd.f32 %v392, %v402
        %s404 = scalar_lea.vmem [#allocation5], 8
        %v405 = vld [vmem:[%s404] sm:$0xff]
        %v406 = vperm.slane %v390, 1
        %v407 = vperm.slane %v391, 1
        %v410 = vrot.slane %v407, 4
        %v411 = vsel %vm399, %v406, %v410
        %v413 = vmul.f32 %v405, %v411
        %v414 = vadd.f32 %v403, %v413
        %s415 = scalar_lea.vmem [#allocation5], 16
        %v416 = vld [vmem:[%s415] sm:$0xff]
        %v417 = vperm.slane %v390, 2
        %v418 = vperm.slane %v391, 2
        %v421 = vrot.slane %v418, 4
        %v422 = vsel %vm399, %v417, %v421
        %v424 = vmul.f32 %v416, %v422
        %v425 = vadd.f32 %v414, %v424
        %s426 = scalar_lea.vmem [#allocation5], 24
        %v427 = vld [vmem:[%s426] sm:$0xff]
        %v428 = vperm.slane %v390, 3
        %v429 = vperm.slane %v391, 3
        %v432 = vrot.slane %v429, 4
        %v433 = vsel %vm399, %v428, %v432
        %v435 = vmul.f32 %v427, %v433
        %v436 = vadd.f32 %v425, %v435
        %s437 = scalar_lea.vmem [#allocation5], 32
        %v438 = vld [vmem:[%s437] sm:$0xff]
        %v439 = vperm.slane %v390, 4
        %v440 = vperm.slane %v391, 4
        %v443 = vrot.slane %v440, 4
        %v444 = vsel %vm399, %v439, %v443
        %v446 = vmul.f32 %v438, %v444
        %v447 = vadd.f32 %v436, %v446
        %s448 = scalar_lea.vmem [#allocation5], 40
        %v449 = vld [vmem:[%s448] sm:$0xff]
        %v450 = vperm.slane %v390, 5
        %v451 = vperm.slane %v391, 5
        %v454 = vrot.slane %v451, 4
        %v455 = vsel %vm399, %v450, %v454
        %v457 = vmul.f32 %v449, %v455
        %v458 = vadd.f32 %v447, %v457
        %s459 = scalar_lea.vmem [#allocation5], 48
        %v460 = vld [vmem:[%s459] sm:$0xff]
        %v461 = vperm.slane %v390, 6
        %v462 = vperm.slane %v391, 6
        %v465 = vrot.slane %v462, 4
        %v466 = vsel %vm399, %v461, %v465
        %v468 = vmul.f32 %v460, %v466
        %v469 = vadd.f32 %v458, %v468
        %s470 = scalar_lea.vmem [#allocation5], 56
        %v471 = vld [vmem:[%s470] sm:$0xff]
        %v472 = vperm.slane %v390, 7
        %v473 = vperm.slane %v391, 7
        %v476 = vrot.slane %v473, 4
        %v477 = vsel %vm399, %v472, %v476
        %v479 = vmul.f32 %v471, %v477
        %v480 = vadd.f32 %v469, %v479
        %v481 = vmax.f32 %v480, 0.0
        %v482 = vmin.f32 %v481, 6.0
        %v483 = vld [vmem:[#allocation10] sm:$0xff]
        %485 = vst [vmem:[#allocation1] ss:$2 sm:$0xff] %v482
        %v486 = vld.sshfl [vmem:[#allocation1] sm:$0xff pattern:$0x75316420]
        %v487 = vld.sshfl [vmem:[#allocation1 + $0x8] sm:$0xff pattern:$0x75316420]
        %490 = vrot.lane.b32.xlu0 %v486, 17
        %v491 = vpop.permute.xlu0 %490
        %492 = vrot.lane.b32.xlu0 %v487, 17
        %v493 = vpop.permute.xlu0 %492
        %v494 = vlaneseq
        %v495 = vand.u32 %v494, 127
        %vm496 = vcmp.lt.s32.totalorder %v495, 17
        %v497 = vsel %vm496, %v491, %v493
        %v498 = vsel %vm496, %v493, %v491
        %v499 = vld [vmem:[#allocation8] sm:$0xff]
        %v502 = vrot.slane %v497, 4
        %v503 = vsel %vm399, %v498, %v502
        %v505 = vmul.f32 %v499, %v503
        %v506 = vadd.f32 %v483, %v505
        %507 = vst [vmem:[#allocation1] ss:$2 sm:$0xff] %v482
        %v508 = vld.sshfl [vmem:[#allocation1] sm:$0xff pattern:$0x75316420]
        %v509 = vld.sshfl [vmem:[#allocation1 + $0x8] sm:$0xff pattern:$0x75316420]
        %512 = vrot.lane.b32.xlu0 %v508, 16
        %v513 = vpop.permute.xlu0 %512
        %514 = vrot.lane.b32.xlu0 %v509, 16
        %v515 = vpop.permute.xlu0 %514
        %vm516 = vcmp.lt.s32.totalorder %v495, 16
        %v517 = vsel %vm516, %v513, %v515
        %v518 = vsel %vm516, %v515, %v513
        %s519 = scalar_lea.vmem [#allocation8], 8
        %v520 = vld [vmem:[%s519] sm:$0xff]
        %v523 = vrot.slane %v517, 4
        %v524 = vsel %vm399, %v518, %v523
        %v526 = vmul.f32 %v520, %v524
        %v527 = vadd.f32 %v506, %v526
        %528 = vst [vmem:[#allocation1] ss:$2 sm:$0xff] %v482
        %v529 = vld.sshfl [vmem:[#allocation1] sm:$0xff pattern:$0x75316420]
        %v530 = vld.sshfl [vmem:[#allocation1 + $0x8] sm:$0xff pattern:$0x75316420]
        %533 = vrot.lane.b32.xlu0 %v529, 15
        %v534 = vpop.permute.xlu0 %533
        %535 = vrot.lane.b32.xlu0 %v530, 15
        %v536 = vpop.permute.xlu0 %535
        %vm537 = vcmp.lt.s32.totalorder %v495, 15
        %v538 = vsel %vm537, %v534, %v536
        %v539 = vsel %vm537, %v536, %v534
        %s540 = scalar_lea.vmem [#allocation8], 16
        %v541 = vld [vmem:[%s540] sm:$0xff]
        %v544 = vrot.slane %v538, 4
        %v545 = vsel %vm399, %v539, %v544
        %v547 = vmul.f32 %v541, %v545
        %v548 = vadd.f32 %v527, %v547
        %549 = vst [vmem:[#allocation1] ss:$2 sm:$0xff] %v482
        %v550 = vld.sshfl [vmem:[#allocation1] sm:$0xff pattern:$0x75316420]
        %v551 = vld.sshfl [vmem:[#allocation1 + $0x8] sm:$0xff pattern:$0x75316420]
        %554 = vrot.lane.b32.xlu0 %v550, 1
        %v555 = vpop.permute.xlu0 %554
        %556 = vrot.lane.b32.xlu0 %v551, 1
        %v557 = vpop.permute.xlu0 %556
        %vm558 = vcmp.lt.s32.totalorder %v495, 1
        %v559 = vsel %vm558, %v555, %v557
        %v560 = vsel %vm558, %v557, %v555
        %s561 = scalar_lea.vmem [#allocation8], 24
        %v562 = vld [vmem:[%s561] sm:$0xff]
        %v565 = vrot.slane %v559, 4
        %v566 = vsel %vm399, %v560, %v565
        %v568 = vmul.f32 %v562, %v566
        %v569 = vadd.f32 %v548, %v568
        %s570 = scalar_lea.vmem [#allocation8], 32
        %v571 = vld [vmem:[%s570] sm:$0xff]
        %v572 = vmul.f32 %v571, %v482
        %v573 = vadd.f32 %v569, %v572
        %574 = vst [vmem:[#allocation1] ss:$2 sm:$0xff] %v482
        %v575 = vld.sshfl [vmem:[#allocation1] sm:$0xff pattern:$0x75316420]
        %v576 = vld.sshfl [vmem:[#allocation1 + $0x8] sm:$0xff pattern:$0x75316420]
        %579 = vrot.lane.b32.xlu0 %v575, 127
        %v580 = vpop.permute.xlu0 %579
        %581 = vrot.lane.b32.xlu0 %v576, 127
        %v582 = vpop.permute.xlu0 %581
        %vm583 = vcmp.lt.s32.totalorder %v495, 127
        %v584 = vsel %vm583, %v580, %v582
        %v585 = vsel %vm583, %v582, %v580
        %s586 = scalar_lea.vmem [#allocation8], 40
        %v587 = vld [vmem:[%s586] sm:$0xff]
        %v590 = vrot.slane %v585, 4
        %v591 = vsel %vm399, %v584, %v590
        %v593 = vmul.f32 %v587, %v591
        %v594 = vadd.f32 %v573, %v593
        %595 = vst [vmem:[#allocation1] ss:$2 sm:$0xff] %v482
        %v596 = vld.sshfl [vmem:[#allocation1] sm:$0xff pattern:$0x75316420]
        %v597 = vld.sshfl [vmem:[#allocation1 + $0x8] sm:$0xff pattern:$0x75316420]
        %600 = vrot.lane.b32.xlu0 %v596, 113
        %v601 = vpop.permute.xlu0 %600
        %602 = vrot.lane.b32.xlu0 %v597, 113
        %v603 = vpop.permute.xlu0 %602
        %vm604 = vcmp.lt.s32.totalorder %v495, 113
        %v605 = vsel %vm604, %v601, %v603
        %v606 = vsel %vm604, %v603, %v601
        %s607 = scalar_lea.vmem [#allocation8], 48
        %v608 = vld [vmem:[%s607] sm:$0xff]
        %v611 = vrot.slane %v606, 4
        %v612 = vsel %vm399, %v605, %v611
        %v614 = vmul.f32 %v608, %v612
        %v615 = vadd.f32 %v594, %v614
        %616 = vst [vmem:[#allocation1] ss:$2 sm:$0xff] %v482
        %v617 = vld.sshfl [vmem:[#allocation1] sm:$0xff pattern:$0x75316420]
        %v618 = vld.sshfl [vmem:[#allocation1 + $0x8] sm:$0xff pattern:$0x75316420]
        %621 = vrot.lane.b32.xlu0 %v617, 112
        %v622 = vpop.permute.xlu0 %621
        %623 = vrot.lane.b32.xlu0 %v618, 112
        %v624 = vpop.permute.xlu0 %623
        %vm625 = vcmp.lt.s32.totalorder %v495, 112
        %v626 = vsel %vm625, %v622, %v624
        %v627 = vsel %vm625, %v624, %v622
        %s628 = scalar_lea.vmem [#allocation8], 56
        %v629 = vld [vmem:[%s628] sm:$0xff]
        %v632 = vrot.slane %v627, 4
        %v633 = vsel %vm399, %v626, %v632
        %v635 = vmul.f32 %v629, %v633
        %v636 = vadd.f32 %v615, %v635
        %637 = vst [vmem:[#allocation1] ss:$2 sm:$0xff] %v482
        %v638 = vld.sshfl [vmem:[#allocation1] sm:$0xff pattern:$0x75316420]
        %v639 = vld.sshfl [vmem:[#allocation1 + $0x8] sm:$0xff pattern:$0x75316420]
        %642 = vrot.lane.b32.xlu0 %v638, 111
        %v643 = vpop.permute.xlu0 %642
        %644 = vrot.lane.b32.xlu0 %v639, 111
        %v645 = vpop.permute.xlu0 %644
        %vm646 = vcmp.lt.s32.totalorder %v495, 111
        %v647 = vsel %vm646, %v643, %v645
        %v648 = vsel %vm646, %v645, %v643
        %s649 = scalar_lea.vmem [#allocation8], 64
        %v650 = vld [vmem:[%s649] sm:$0xff]
        %v653 = vrot.slane %v648, 4
        %v654 = vsel %vm399, %v647, %v653
        %v656 = vmul.f32 %v650, %v654
        %v657 = vadd.f32 %v636, %v656
        %v658 = vmax.f32 %v657, 0.0
        %v659 = vmin.f32 %v658, 6.0
        %v660 = vld [vmem:[#allocation13] sm:$0xff]
        %v661 = vld [vmem:[#allocation13 + $0x8] sm:$0xff]
        %v662 = vld [vmem:[#allocation11] sm:$0xff]
        %v663 = vld [vmem:[#allocation11 + $0x8] sm:$0xff]
        %v665 = vperm.slane %v659, 0
        %v666 = vperm.slane %v659, 4
        %v669 = vperm.slane %v665, 0
        %v670 = vperm.slane %v666, 0
        %v671 = vmul.f32 %v662, %v669
        %v672 = vmul.f32 %v663, %v670
        %v673 = vadd.f32 %v660, %v671
        %v674 = vadd.f32 %v661, %v672
        %s675 = scalar_lea.vmem [#allocation11], 16
        %v676 = vld [vmem:[%s675] sm:$0xff]
        %v677 = vld [vmem:[%s675 + $0x8] sm:$0xff]
        %v678 = vperm.slane %v659, 1
        %v679 = vperm.slane %v659, 5
        %v682 = vperm.slane %v678, 1
        %v683 = vperm.slane %v679, 1
        %v684 = vmul.f32 %v676, %v682
        %v685 = vmul.f32 %v677, %v683
        %v686 = vadd.f32 %v673, %v684
        %v687 = vadd.f32 %v674, %v685
        %s688 = scalar_lea.vmem [#allocation11], 32
        %v689 = vld [vmem:[%s688] sm:$0xff]
        %v690 = vld [vmem:[%s688 + $0x8] sm:$0xff]
        %v691 = vperm.slane %v659, 2
        %v692 = vperm.slane %v659, 6
        %v695 = vperm.slane %v691, 2
        %v696 = vperm.slane %v692, 2
        %v697 = vmul.f32 %v689, %v695
        %v698 = vmul.f32 %v690, %v696
        %v699 = vadd.f32 %v686, %v697
        %v700 = vadd.f32 %v687, %v698
        %s701 = scalar_lea.vmem [#allocation11], 48
        %v702 = vld [vmem:[%s701] sm:$0xff]
        %v703 = vld [vmem:[%s701 + $0x8] sm:$0xff]
        %v704 = vperm.slane %v659, 3
        %v705 = vperm.slane %v659, 7
        %v708 = vperm.slane %v704, 3
        %v709 = vperm.slane %v705, 3
        %v710 = vmul.f32 %v702, %v708
        %v711 = vmul.f32 %v703, %v709
        %v712 = vadd.f32 %v699, %v710
        %v713 = vadd.f32 %v700, %v711
        %v714 = vmax.f32 %v712, 0.0
        %v715 = vmax.f32 %v713, 0.0
        %v716 = vmin.f32 %v714, 6.0
        %v717 = vmin.f32 %v715, 6.0
        %v718 = vadd.f32 %v390, %v716
        %v719 = vadd.f32 %v391, %v717
        %720 = vst [vmem:[%s389] sm:$0xff] %v718
        %721 = vst [vmem:[%s389 + $0x8] sm:$0xff] %v719
        %s722 = sand.u32 %s187, 1
        %s723 = scalar_lea.sflag [#allocation4], %s722
        %s724 = sand.u32 %s187, 1
        %s725 = smul.addr %s724, 16
        %s726 = scalar_lea.vmem [#allocation14], %s725
        // Predicated region
        $region77: #{tpu_custom_call.1} parent=47 // pred_check
          %p727 = pneg %p197
        $region78: #{tpu_custom_call.1} parent=47 // pred_check_branch
          %729 = sbr.rel (%p727) target = $region80
        $region79: #{tpu_custom_call.1} parent=47 // pred_region
          %731 = vsyncadd %s723, 0
          %s732 = smul.addr %s27, 2
          %s733 = smul.addr %s732, 8
          %s734 = scalar_lea.hbm %s7, %s733
          %s736 = sshll.u32 %s726, 4
          %s737 = int_to_ptr.vmem [resolvable:$true] %s736
          %s738 = sshll.u32 %s734, 4
          %s739 = int_to_ptr.hbm [resolvable:$true] %s738
          %741 = dma.vmem_to_hbm [thread:$0]  %s737, 256, %s739, %s723
        $region80: #{tpu_custom_call.1} parent=47 // pred_fallthru
          _
      $region48: #{tpu_custom_call.1} parent=5 // pred_fallthru
        _
      %p742 = scmp.le.s32.totalorder 2, %s22
      // Predicated region
      $region81: #{tpu_custom_call.1} parent=5 // pred_check
        %p743 = pneg %p742
      $region82: #{tpu_custom_call.1} parent=5 // pred_check_branch
        %745 = sbr.rel (%p743) target = $region84
      $region83: #{tpu_custom_call.1} parent=5 // pred_region
        %s746 = ssub.s32 %s22, 2
        // Predicated region
        $region85: #{tpu_custom_call.1} parent=83 // pred_check
          %p747 = pneg %p203
        $region86: #{tpu_custom_call.1} parent=83 // pred_check_branch
          %749 = sbr.rel (%p747) target = $region88
        $region87: #{tpu_custom_call.1} parent=83 // pred_region
          %s750 = sand.u32 %s188, 1
          %s751 = scalar_lea.sflag [#allocation4], %s750
          %s752 = sand.u32 %s188, 1
          %s753 = smul.addr %s752, 16
          %s754 = scalar_lea.vmem [#allocation14], %s753
          %756 = dma.done %s751, 256
        $region88: #{tpu_custom_call.1} parent=83 // pred_fallthru
          _
      $region84: #{tpu_custom_call.1} parent=5 // pred_fallthru
        _
    $region6: #{tpu_custom_call.1} parent=1 // loop_footer
      %s26 = sadd.s32 1, %s22
    $region7: #{tpu_custom_call.1} parent=1 // loop_footer_branch
      %21 = sbr.rel target = $region3
    $region8: #{tpu_custom_call.1} parent=1 // loop_exit
      _
    %757 = vsyncpa [#allocation3], 1
    %s758 = scalar_lea.sflag [#allocation3], 1
    %759 = vsyncpa %s758, 1
    %760 = vsyncpa [#allocation6], 1
    %761 = vsyncpa [#allocation9], 1
    %762 = vsyncpa [#allocation12], 1
    %763 = vsyncpa [#allocation4], 1
    %s764 = scalar_lea.sflag [#allocation4], 1
    %765 = vsyncpa %s764, 1

</llo_original>
